<compile_context>
chip_gen: v5e
topology: v5e:2x2
jax: 0.10.0
libtpu: 0.0.40
codegen_flags: <defaults>
</compile_context>

<pallas_src>
import jax
import jax.numpy as jnp
from jax import lax
from jax.experimental import pallas as pl
from jax.experimental.pallas import tpu as pltpu


def feature_layer_kernel(x_ref, out_ref):
    # x_ref / out_ref: (Bblk, N, F) blocks covering part (or all) of the batch.
    xb = x_ref[...]                                   # (Bblk, N, F) float32
    _, n, f = xb.shape
    xs = xb * (1.0 / n)                               # fold 1/N into one operand

    if n <= f:
        # out = sigmoid( (x x^T / N) x ) : Gram is N x N (smaller when N < F).
        gram = jnp.einsum('bnf,bmf->bnm', xs, xb,
                          preferred_element_type=jnp.float32)    # (Bblk, N, N)
        pre = jnp.einsum('bnm,bmf->bnf', gram, xb,
                         preferred_element_type=jnp.float32)     # (Bblk, N, F)
    else:
        # out = sigmoid( x (x^T x / N) ) : Gram is F x F (smaller when F <= N).
        attn = jnp.einsum('bnf,bng->bfg', xs, xb,
                          preferred_element_type=jnp.float32)    # (Bblk, F, F)
        pre = jnp.einsum('bnf,bfg->bng', xb, attn,
                         preferred_element_type=jnp.float32)     # (Bblk, N, F)

    out_ref[...] = jax.nn.sigmoid(pre).astype(out_ref.dtype)


def feature_layer_forward(x, *, num_batch_blocks=None):
    B, N, F = x.shape
    if num_batch_blocks is None:
        # Two grid steps when possible so both v7x TensorCores get work;
        # on v5e/v6e (1 TC) the second step costs almost nothing.
        num_batch_blocks = 2 if (B >= 2 and B % 2 == 0) else 1
    assert B % num_batch_blocks == 0
    bblk = B // num_batch_blocks

    mn, mx = min(N, F), max(N, F)
    cost = pl.CostEstimate(
        flops=4 * B * mn * mn * mx,          # two MXU matmuls, reassociated
        transcendentals=B * N * F,           # sigmoid
        bytes_accessed=2 * B * N * F * 4,    # read x + write out (f32)
    )

    return pl.pallas_call(
        feature_layer_kernel,
        out_shape=jax.ShapeDtypeStruct((B, N, F), jnp.float32),
        grid=(num_batch_blocks,),
        in_specs=[pl.BlockSpec((bblk, N, F), lambda b: (b, 0, 0))],
        out_specs=pl.BlockSpec((bblk, N, F), lambda b: (b, 0, 0)),
        compiler_params=pltpu.CompilerParams(
            dimension_semantics=("parallel",)),
        cost_estimate=cost,
    )(x)


def feature_layer_ref(x):
    # Pure-JAX reference mirroring the torch module literally
    # (attention kept in float32 instead of float64: TPU has no native double).
    n = x.shape[1]
    attn = jnp.einsum('bnf,bng->bfg', x, x,
                      precision=lax.Precision.HIGHEST) / n          # (B, F, F)
    h = jax.nn.sigmoid(jnp.einsum('bfg,bng->bfn', attn, x,
                                  precision=lax.Precision.HIGHEST))  # (B, F, N)
    return jnp.transpose(h, (0, 2, 1))                               # (B, N, F)


if __name__ == "__main__":
    # x is (batch, rows, features); F = 128 keeps vregs lane-dense and stores
    # unmasked, N = 64 is sublane-aligned.
    B, N, F = 4, 64, 128

    key = jax.random.PRNGKey(0)
    x = jax.random.normal(key, (B, N, F), dtype=jnp.float32)

    out = feature_layer_forward(x)
    out = jax.block_until_ready(out)

    ref = feature_layer_ref(x)
    assert out.shape == (B, N, F)
    assert jnp.allclose(out, ref, atol=5e-5, rtol=1e-4), float(
        jnp.max(jnp.abs(out - ref)))

    # TODO(synk): torch casts `attention` to float64; TPU has no native f64, so
    # the Gram matrix and both matmuls are computed in float32 here.

    print("KERNEL_OK")
</pallas_src>

<mosaic_0001>
module attributes {stable_mosaic.version = 11 : i64} {
  func.func @feature_layer_kernel(%arg0: i32, %arg1: memref<2x64x128xf32, #tpu.memory_space<vmem>>, %arg2: memref<2x64x128xf32, #tpu.memory_space<vmem>>) attributes {dimension_semantics = [#tpu.dimension_semantics<parallel>], iteration_bounds = array<i64: 2>, scalar_prefetch = 0 : i64, scratch_operands = 0 : i64, tpu.core_type = #tpu.core_type<tc>, window_params = [{transform_indices = @transform_0, window_bounds = array<i64: 2, 64, 128>}, {transform_indices = @transform_1, window_bounds = array<i64: 2, 64, 128>}]} {
    %c0 = arith.constant 0 : index
    %c0_0 = arith.constant 0 : index
    %c0_1 = arith.constant 0 : index
    %0 = vector.load %arg1[%c0, %c0_0, %c0_1] : memref<2x64x128xf32, #tpu.memory_space<vmem>>, vector<2x64x128xf32>
    %cst = arith.constant 1.562500e-02 : f32
    %1 = vector.broadcast %cst : f32 to vector<2x64x128xf32>
    %2 = arith.mulf %0, %1 : vector<2x64x128xf32>
    "tpu.trace_start"() <{level = 10 : i32, message = "bnf,bmf->bnm"}> : () -> ()
    %cst_2 = arith.constant dense<0.000000e+00> : vector<2x64x64xf32>
    %3 = tpu.matmul %2, %0, %cst_2 {dimension_numbers = #tpu.dot_dimension_numbers<[2], [2], [1], [1], [0, 0, 0, 1, 1, 1], [0], [0]>} : vector<2x64x128xf32>, vector<2x64x128xf32>, vector<2x64x64xf32> -> vector<2x64x64xf32>
    "tpu.trace_stop"() : () -> ()
    "tpu.trace_start"() <{level = 10 : i32, message = "bnm,bmf->bnf"}> : () -> ()
    %cst_3 = arith.constant dense<0.000000e+00> : vector<2x64x128xf32>
    %4 = tpu.matmul %3, %0, %cst_3 {dimension_numbers = #tpu.dot_dimension_numbers<[2], [1], [1], [2], [0, 0, 0, 1, 1, 2], [0], [0]>} : vector<2x64x64xf32>, vector<2x64x128xf32>, vector<2x64x128xf32> -> vector<2x64x128xf32>
    "tpu.trace_stop"() : () -> ()
    %5 = arith.negf %4 : vector<2x64x128xf32>
    %6 = math.exp %5 : vector<2x64x128xf32>
    %cst_4 = arith.constant 1.000000e+00 : f32
    %7 = vector.broadcast %cst_4 : f32 to vector<2x64x128xf32>
    %8 = arith.addf %7, %6 : vector<2x64x128xf32>
    %9 = arith.divf %7, %8 : vector<2x64x128xf32>
    %c0_5 = arith.constant 0 : index
    %c0_6 = arith.constant 0 : index
    %c0_7 = arith.constant 0 : index
    %10 = vector.load %arg2[%c0_5, %c0_6, %c0_7] : memref<2x64x128xf32, #tpu.memory_space<vmem>>, vector<2x64x128xf32>
    tpu.vector_store %arg2[%c0_5, %c0_6, %c0_7], %9 {strides = array<i32>} : memref<2x64x128xf32, #tpu.memory_space<vmem>>, vector<2x64x128xf32>,
    return
  }
  func.func @transform_0(%arg0: i32) -> (i32, i32, i32) {
    %c0_i32 = arith.constant 0 : i32
    %c0_i32_0 = arith.constant 0 : i32
    %c0_i32_1 = arith.constant 0 : i32
    return %arg0, %c0_i32, %c0_i32_0 : i32, i32, i32
  }
  func.func @transform_1(%arg0: i32) -> (i32, i32, i32) {
    %c0_i32 = arith.constant 0 : i32
    %c0_i32_0 = arith.constant 0 : i32
    %c0_i32_1 = arith.constant 0 : i32
    return %arg0, %c0_i32, %c0_i32_0 : i32, i32, i32
  }
}

</mosaic_0001>

<llo_original>
// kernel: tpu_custom_call.1
$region0: #{tpu_custom_call.1}
  #allocation0 [shape = 'u32[]', space=smem, size = 0x4, offset = 0x4, fixed_abs, tag = 'smem constant byte address 0x4 - core index']
  #allocation1 [shape = 'u32[72,128]{1,0:T(1,128)}', space=vmem, size = 0x9000, scoped, tag = 'internal scratch']
  %s0 = inlined_call_operand.hbm [shape: f32[4,64,128], index: 0, kind: input, shape index: {}]
  %s1 = inlined_call_operand.hbm [shape: f32[4,64,128], index: 1, kind: output, shape index: {}]
  %s2 = sld [smem:[#allocation0]]
  $region41: #{tpu_custom_call.1} parent=0
    _
  %s4 = ssub.s32 1, %s2
  %s5 = scalar_select 0, %s4, %s2
  $region1: #{tpu_custom_call.1} parent=0
    #allocation2 [shape = 'u8[131072]{0}', space=vmem, size = 0x20000, scoped, tag = 'input window, operand 0']
    #allocation3 [shape = 's32[2]{0}', space=sflag, size = 0x8, scoped, tag = 'scoped memory for tpu_custom_call.1']
    #allocation4 [shape = 's32[2]{0}', space=sflag, size = 0x8, scoped, tag = 'scoped memory for tpu_custom_call.1']
    #allocation5 [shape = 'u8[131072]{0}', space=vmem, size = 0x20000, scoped, tag = 'output window, operand 0']
    %6 = vsyncpa [#allocation3], 0
    %s7 = scalar_lea.sflag [#allocation3], 1
    %8 = vsyncpa %s7, 0
    %9 = vsyncpa [#allocation4], 0
    %s10 = scalar_lea.sflag [#allocation4], 1
    %11 = vsyncpa %s10, 0
    loop: start=0, step=1, limit=4
    $region2: #{tpu_custom_call.1} parent=1 // loop_pre_header
      _
    $region3: #{tpu_custom_call.1} parent=1 // loop_header
      %s13 = sphi 0, %s17
      %p14 = scmp.ge.s32.totalorder %s13, 4
      %s23 = sphi 0, %s25
      %s26 = sphi 0, %s23
      %s27 = sphi 0, %s26
      %s43 = sphi 0, %s27
      %s49 = sphi 0, %s51
      %s52 = sphi 0, %s49
      %s53 = sphi 0, %s52
      %s69 = sphi 0, %s53
    $region4: #{tpu_custom_call.1} parent=1 // loop_header_branch
      %16 = sbr.rel (%p14) target = $region8
    $region5: #{tpu_custom_call.1} parent=1 // loop_body
      %s18 = ssub.s32 %s13, 1
      %s19 = ssub.s32 %s13, 2
      %s20 = sadd.s32 %s13, 1
      %s21 = ssub.s32 %s13, %s20
      %p22 = scmp.eq.s32.totalorder %s21, 0
      %s24 = sadd.s32 %s23, 1
      %s25 = scalar_select %p22, %s23, %s24
      %p28 = pneg %p22
      %p29 = scmp.eq.s32.totalorder %s13, 1
      %p30 = por %p28, %p29
      %p31 = scmp.ne.s32.totalorder %s23, %s26
      %p32 = scmp.eq.s32.totalorder %s13, 0
      %p33 = por %p31, %p32
      %p34 = scmp.ne.s32.totalorder %s23, %s26
      %p35 = scmp.eq.s32.totalorder %s18, 1
      %p36 = por %p34, %p35
      %p37 = scmp.ne.s32.totalorder %s26, %s27
      %p38 = scmp.eq.s32.totalorder %s18, 0
      %p39 = por %p37, %p38
      %p40 = scmp.ne.s32.totalorder %s26, %s27
      %p41 = scmp.eq.s32.totalorder %s19, 1
      %p42 = por %p40, %p41
      %p44 = scmp.ne.s32.totalorder %s27, %s43
      %p45 = scmp.eq.s32.totalorder %s19, 0
      %p46 = por %p44, %p45
      %s47 = ssub.s32 %s13, %s20
      %p48 = scmp.eq.s32.totalorder %s47, 0
      %s50 = sadd.s32 %s49, 1
      %s51 = scalar_select %p48, %s49, %s50
      %p54 = pneg %p48
      %p55 = scmp.eq.s32.totalorder %s13, 1
      %p56 = por %p54, %p55
      %p57 = scmp.ne.s32.totalorder %s49, %s52
      %p58 = scmp.eq.s32.totalorder %s13, 0
      %p59 = por %p57, %p58
      %p60 = scmp.ne.s32.totalorder %s49, %s52
      %p61 = scmp.eq.s32.totalorder %s18, 1
      %p62 = por %p60, %p61
      %p63 = scmp.ne.s32.totalorder %s52, %s53
      %p64 = scmp.eq.s32.totalorder %s18, 0
      %p65 = por %p63, %p64
      %p66 = scmp.ne.s32.totalorder %s52, %s53
      %p67 = scmp.eq.s32.totalorder %s19, 1
      %p68 = por %p66, %p67
      %p70 = scmp.ne.s32.totalorder %s53, %s69
      %p71 = scmp.eq.s32.totalorder %s19, 0
      %p72 = por %p70, %p71
      %p73 = scmp.le.s32.totalorder 1, %s13
      %p74 = scmp.lt.s32.totalorder %s13, 3
      %p75 = pnand %p73, %p74
      %p76 = pneg %p75
      // Predicated region
      $region9: #{tpu_custom_call.1} parent=5 // pred_check
        _
      $region10: #{tpu_custom_call.1} parent=5 // pred_check_branch
        %78 = sbr.rel (%p75) target = $region12
      $region11: #{tpu_custom_call.1} parent=5 // pred_region
        %s79 = ssub.s32 %s13, 1
      $region12: #{tpu_custom_call.1} parent=5 // pred_fallthru
        _
      %p80 = scmp.lt.s32.totalorder %s13, 2
      // Predicated region
      $region13: #{tpu_custom_call.1} parent=5 // pred_check
        %p81 = pneg %p80
      $region14: #{tpu_custom_call.1} parent=5 // pred_check_branch
        %83 = sbr.rel (%p81) target = $region16
      $region15: #{tpu_custom_call.1} parent=5 // pred_region
        // Predicated region
        $region17: #{tpu_custom_call.1} parent=15 // pred_check
          %p84 = pneg %p33
        $region18: #{tpu_custom_call.1} parent=15 // pred_check_branch
          %86 = sbr.rel (%p84) target = $region20
        $region19: #{tpu_custom_call.1} parent=15 // pred_region
          %s87 = sand.u32 %s23, 1
          %s88 = scalar_lea.sflag [#allocation3], %s87
          %s89 = sand.u32 %s23, 1
          %s90 = smul.addr %s89, 128
          %s91 = scalar_lea.vmem [#allocation2], %s90
          %s92 = smul.u32 2, %s13
          %94 = vsyncadd %s88, 0
          %s95 = smul.addr %s92, 8
          %s96 = smul.addr %s95, 8
          %s97 = scalar_lea.hbm %s0, %s96
          %s98 = sshll.u32 %s97, 4
          %s99 = int_to_ptr.hbm [resolvable:$true] %s98
          %s100 = sshll.u32 %s91, 4
          %s101 = int_to_ptr.vmem [resolvable:$true] %s100
          %106 = dma.hbm_to_vmem [thread:$0]  %s99, 2048, %s101, %s88, 128, 128, 8
        $region20: #{tpu_custom_call.1} parent=15 // pred_fallthru
          _
      $region16: #{tpu_custom_call.1} parent=5 // pred_fallthru
        _
      %p107 = scmp.le.s32.totalorder 1, %s13
      %p108 = scmp.lt.s32.totalorder %s13, 3
      %p109 = pnand %p107, %p108
      %p110 = pneg %p109
      // Predicated region
      $region21: #{tpu_custom_call.1} parent=5 // pred_check
        _
      $region22: #{tpu_custom_call.1} parent=5 // pred_check_branch
        %112 = sbr.rel (%p109) target = $region24
      $region23: #{tpu_custom_call.1} parent=5 // pred_region
        %s113 = ssub.s32 %s13, 1
        %s114 = sand.u32 %s26, 1
        %s115 = scalar_lea.sflag [#allocation3], %s114
        %s116 = sand.u32 %s26, 1
        %s117 = smul.addr %s116, 128
        %s118 = scalar_lea.vmem [#allocation2], %s117
        // Predicated region
        $region25: #{tpu_custom_call.1} parent=23 // pred_check
          %p119 = pneg %p39
        $region26: #{tpu_custom_call.1} parent=23 // pred_check_branch
          %121 = sbr.rel (%p119) target = $region28
        $region27: #{tpu_custom_call.1} parent=23 // pred_region
          %123 = dma.done %s115, 2048
        $region28: #{tpu_custom_call.1} parent=23 // pred_fallthru
          _
        %s124 = sand.u32 %s26, 1
        %s125 = scalar_lea.sflag [#allocation3], %s124
        %s126 = sand.u32 %s26, 1
        %s127 = smul.addr %s126, 128
        %s128 = scalar_lea.vmem [#allocation2], %s127
        %p129 = pneg %p39
        %p130 = pneg %p36
        %p131 = pneg %p65
        %p132 = pneg %p62
        %s133 = sand.u32 %s52, 1
        %s134 = scalar_lea.sflag [#allocation4], %s133
        %s135 = sand.u32 %s52, 1
        %s136 = smul.addr %s135, 128
        %s137 = scalar_lea.vmem [#allocation5], %s136
        %s138 = smul.u32 2, %s18
        %s139 = smul.u32 2, %s18
        %v140 = vld [vmem:[%s118] sm:$0xff]
        %v141 = vld [vmem:[%s118 + $0x8] sm:$0xff]
        %v142 = vld [vmem:[%s118 + $0x10] sm:$0xff]
        %v143 = vld [vmem:[%s118 + $0x18] sm:$0xff]
        %v144 = vld [vmem:[%s118 + $0x20] sm:$0xff]
        %v145 = vld [vmem:[%s118 + $0x28] sm:$0xff]
        %v146 = vld [vmem:[%s118 + $0x30] sm:$0xff]
        %v147 = vld [vmem:[%s118 + $0x38] sm:$0xff]
        %v148 = vld [vmem:[%s118 + $0x40] sm:$0xff]
        %v149 = vld [vmem:[%s118 + $0x48] sm:$0xff]
        %v150 = vld [vmem:[%s118 + $0x50] sm:$0xff]
        %v151 = vld [vmem:[%s118 + $0x58] sm:$0xff]
        %v152 = vld [vmem:[%s118 + $0x60] sm:$0xff]
        %v153 = vld [vmem:[%s118 + $0x68] sm:$0xff]
        %v154 = vld [vmem:[%s118 + $0x70] sm:$0xff]
        %v155 = vld [vmem:[%s118 + $0x78] sm:$0xff]
        %v156 = vmul.f32 %v140, 0.015625
        %v157 = vmul.f32 %v141, 0.015625
        %v158 = vmul.f32 %v142, 0.015625
        %v159 = vmul.f32 %v143, 0.015625
        %v160 = vmul.f32 %v144, 0.015625
        %v161 = vmul.f32 %v145, 0.015625
        %v162 = vmul.f32 %v146, 0.015625
        %v163 = vmul.f32 %v147, 0.015625
        %v164 = vmul.f32 %v148, 0.015625
        %v165 = vmul.f32 %v149, 0.015625
        %v166 = vmul.f32 %v150, 0.015625
        %v167 = vmul.f32 %v151, 0.015625
        %v168 = vmul.f32 %v152, 0.015625
        %v169 = vmul.f32 %v153, 0.015625
        %v170 = vmul.f32 %v154, 0.015625
        %v171 = vmul.f32 %v155, 0.015625
        %172 = vmatpush.xpose.msra.mxu0 0.0
        %173 = vmatpush.xpose.msra.mxu0 0.0
        %174 = vmatpush.xpose.msra.mxu0 0.0
        %175 = vmatpush.xpose.msra.mxu0 0.0
        %176 = vmatpush.xpose.msra.mxu0 0.0
        %177 = vmatpush.xpose.msra.mxu0 0.0
        %178 = vmatpush.xpose.msra.mxu0 0.0
        %179 = vmatpush.xpose.msra.mxu0 0.0
        %180 = vmatpush.xpose.msra.mxu0 %v147
        %181 = vmatpush.xpose.msra.mxu0 %v146
        %182 = vmatpush.xpose.msra.mxu0 %v145
        %183 = vmatpush.xpose.msra.mxu0 %v144
        %184 = vmatpush.xpose.msra.mxu0 %v143
        %185 = vmatpush.xpose.msra.mxu0 %v142
        %186 = vmatpush.xpose.msra.mxu0 %v141
        %187 = vmatpush.xpose.msra.mxu0 %v140
        %188 = vmatmul.f32.gmra.mxu0 %v156
        %v189 = vpop.f32.mrf.mxu0
        %v190 = vadd.f32 0.0, %v189
        %191 = vmatmul.f32.gmra.mxu0 %v157
        %v192 = vpop.f32.mrf.mxu0
        %v193 = vadd.f32 0.0, %v192
        %194 = vmatmul.f32.gmra.mxu0 %v158
        %v195 = vpop.f32.mrf.mxu0
        %v196 = vadd.f32 0.0, %v195
        %197 = vmatmul.f32.gmra.mxu0 %v159
        %v198 = vpop.f32.mrf.mxu0
        %v199 = vadd.f32 0.0, %v198
        %200 = vmatmul.f32.gmra.mxu0 %v160
        %v201 = vpop.f32.mrf.mxu0
        %v202 = vadd.f32 0.0, %v201
        %203 = vmatmul.f32.gmra.mxu0 %v161
        %v204 = vpop.f32.mrf.mxu0
        %v205 = vadd.f32 0.0, %v204
        %206 = vmatmul.f32.gmra.mxu0 %v162
        %v207 = vpop.f32.mrf.mxu0
        %v208 = vadd.f32 0.0, %v207
        %209 = vmatmul.f32.gmra.mxu0 %v163
        %v210 = vpop.f32.mrf.mxu0
        %v211 = vadd.f32 0.0, %v210
        %212 = vdwg.mxu0
        %213 = vmatpush.xpose.msra.mxu0 0.0
        %214 = vmatpush.xpose.msra.mxu0 0.0
        %215 = vmatpush.xpose.msra.mxu0 0.0
        %216 = vmatpush.xpose.msra.mxu0 0.0
        %217 = vmatpush.xpose.msra.mxu0 0.0
        %218 = vmatpush.xpose.msra.mxu0 0.0
        %219 = vmatpush.xpose.msra.mxu0 0.0
        %220 = vmatpush.xpose.msra.mxu0 0.0
        %221 = vmatpush.xpose.msra.mxu0 %v155
        %222 = vmatpush.xpose.msra.mxu0 %v154
        %223 = vmatpush.xpose.msra.mxu0 %v153
        %224 = vmatpush.xpose.msra.mxu0 %v152
        %225 = vmatpush.xpose.msra.mxu0 %v151
        %226 = vmatpush.xpose.msra.mxu0 %v150
        %227 = vmatpush.xpose.msra.mxu0 %v149
        %228 = vmatpush.xpose.msra.mxu0 %v148
        %229 = vmatmul.f32.gmra.mxu0 %v164
        %v230 = vpop.f32.mrf.mxu0
        %v231 = vadd.f32 0.0, %v230
        %232 = vmatmul.f32.gmra.mxu0 %v165
        %v233 = vpop.f32.mrf.mxu0
        %v234 = vadd.f32 0.0, %v233
        %235 = vmatmul.f32.gmra.mxu0 %v166
        %v236 = vpop.f32.mrf.mxu0
        %v237 = vadd.f32 0.0, %v236
        %238 = vmatmul.f32.gmra.mxu0 %v167
        %v239 = vpop.f32.mrf.mxu0
        %v240 = vadd.f32 0.0, %v239
        %241 = vmatmul.f32.gmra.mxu0 %v168
        %v242 = vpop.f32.mrf.mxu0
        %v243 = vadd.f32 0.0, %v242
        %244 = vmatmul.f32.gmra.mxu0 %v169
        %v245 = vpop.f32.mrf.mxu0
        %v246 = vadd.f32 0.0, %v245
        %247 = vmatmul.f32.gmra.mxu0 %v170
        %v248 = vpop.f32.mrf.mxu0
        %v249 = vadd.f32 0.0, %v248
        %250 = vmatmul.f32.gmra.mxu0 %v171
        %v251 = vpop.f32.mrf.mxu0
        %v252 = vadd.f32 0.0, %v251
        %253 = vdwg.mxu0
        %vm254 = vcmask 523264
        %v256 = vsel %vm254, %v190, 0
        %v259 = vsel %vm254, %v193, 0
        %v262 = vsel %vm254, %v196, 0
        %v265 = vsel %vm254, %v199, 0
        %v268 = vsel %vm254, %v202, 0
        %v271 = vsel %vm254, %v205, 0
        %v274 = vsel %vm254, %v208, 0
        %v277 = vsel %vm254, %v211, 0
        %279 = vmatpush.msra.mxu0 0.0
        %280 = vmatpush.msra.mxu0 0.0
        %281 = vmatpush.msra.mxu0 0.0
        %282 = vmatpush.msra.mxu0 0.0
        %283 = vmatpush.msra.mxu0 0.0
        %284 = vmatpush.msra.mxu0 0.0
        %285 = vmatpush.msra.mxu0 0.0
        %286 = vmatpush.msra.mxu0 0.0
        %287 = vmatpush.msra.mxu0 %v147
        %288 = vmatpush.msra.mxu0 %v146
        %289 = vmatpush.msra.mxu0 %v145
        %290 = vmatpush.msra.mxu0 %v144
        %291 = vmatpush.msra.mxu0 %v143
        %292 = vmatpush.msra.mxu0 %v142
        %293 = vmatpush.msra.mxu0 %v141
        %294 = vmatpush.msra.mxu0 %v140
        %295 = vmatmul.f32.gmra.mxu0 %v256
        %v296 = vpop.f32.mrf.mxu0
        %v297 = vadd.f32 0.0, %v296
        %298 = vmatmul.f32.gmra.mxu0 %v259
        %v299 = vpop.f32.mrf.mxu0
        %v300 = vadd.f32 0.0, %v299
        %301 = vmatmul.f32.gmra.mxu0 %v262
        %v302 = vpop.f32.mrf.mxu0
        %v303 = vadd.f32 0.0, %v302
        %304 = vmatmul.f32.gmra.mxu0 %v265
        %v305 = vpop.f32.mrf.mxu0
        %v306 = vadd.f32 0.0, %v305
        %307 = vmatmul.f32.gmra.mxu0 %v268
        %v308 = vpop.f32.mrf.mxu0
        %v309 = vadd.f32 0.0, %v308
        %310 = vmatmul.f32.gmra.mxu0 %v271
        %v311 = vpop.f32.mrf.mxu0
        %v312 = vadd.f32 0.0, %v311
        %313 = vmatmul.f32.gmra.mxu0 %v274
        %v314 = vpop.f32.mrf.mxu0
        %v315 = vadd.f32 0.0, %v314
        %316 = vmatmul.f32.gmra.mxu0 %v277
        %v317 = vpop.f32.mrf.mxu0
        %v318 = vadd.f32 0.0, %v317
        %319 = vdwg.mxu0
        %v321 = vsel %vm254, %v231, 0
        %v324 = vsel %vm254, %v234, 0
        %v327 = vsel %vm254, %v237, 0
        %v330 = vsel %vm254, %v240, 0
        %v333 = vsel %vm254, %v243, 0
        %v336 = vsel %vm254, %v246, 0
        %v339 = vsel %vm254, %v249, 0
        %v342 = vsel %vm254, %v252, 0
        %344 = vmatpush.msra.mxu0 0.0
        %345 = vmatpush.msra.mxu0 0.0
        %346 = vmatpush.msra.mxu0 0.0
        %347 = vmatpush.msra.mxu0 0.0
        %348 = vmatpush.msra.mxu0 0.0
        %349 = vmatpush.msra.mxu0 0.0
        %350 = vmatpush.msra.mxu0 0.0
        %351 = vmatpush.msra.mxu0 0.0
        %352 = vmatpush.msra.mxu0 %v155
        %353 = vmatpush.msra.mxu0 %v154
        %354 = vmatpush.msra.mxu0 %v153
        %355 = vmatpush.msra.mxu0 %v152
        %356 = vmatpush.msra.mxu0 %v151
        %357 = vmatpush.msra.mxu0 %v150
        %358 = vmatpush.msra.mxu0 %v149
        %359 = vmatpush.msra.mxu0 %v148
        %360 = vmatmul.f32.gmra.mxu0 %v321
        %v361 = vpop.f32.mrf.mxu0
        %v362 = vadd.f32 0.0, %v361
        %363 = vmatmul.f32.gmra.mxu0 %v324
        %v364 = vpop.f32.mrf.mxu0
        %v365 = vadd.f32 0.0, %v364
        %366 = vmatmul.f32.gmra.mxu0 %v327
        %v367 = vpop.f32.mrf.mxu0
        %v368 = vadd.f32 0.0, %v367
        %369 = vmatmul.f32.gmra.mxu0 %v330
        %v370 = vpop.f32.mrf.mxu0
        %v371 = vadd.f32 0.0, %v370
        %372 = vmatmul.f32.gmra.mxu0 %v333
        %v373 = vpop.f32.mrf.mxu0
        %v374 = vadd.f32 0.0, %v373
        %375 = vmatmul.f32.gmra.mxu0 %v336
        %v376 = vpop.f32.mrf.mxu0
        %v377 = vadd.f32 0.0, %v376
        %378 = vmatmul.f32.gmra.mxu0 %v339
        %v379 = vpop.f32.mrf.mxu0
        %v380 = vadd.f32 0.0, %v379
        %381 = vmatmul.f32.gmra.mxu0 %v342
        %v382 = vpop.f32.mrf.mxu0
        %v383 = vadd.f32 0.0, %v382
        %384 = vdwg.mxu0
        %v385 = vxor.u32 %v297, 2147483648
        %v386 = vxor.u32 %v300, 2147483648
        %v387 = vxor.u32 %v303, 2147483648
        %v388 = vxor.u32 %v306, 2147483648
        %v389 = vxor.u32 %v309, 2147483648
        %v390 = vxor.u32 %v312, 2147483648
        %v391 = vxor.u32 %v315, 2147483648
        %v392 = vxor.u32 %v318, 2147483648
        %v393 = vxor.u32 %v362, 2147483648
        %v394 = vxor.u32 %v365, 2147483648
        %v395 = vxor.u32 %v368, 2147483648
        %v396 = vxor.u32 %v371, 2147483648
        %v397 = vxor.u32 %v374, 2147483648
        %v398 = vxor.u32 %v377, 2147483648
        %v399 = vxor.u32 %v380, 2147483648
        %v400 = vxor.u32 %v383, 2147483648
        %v401 = vmul.f32 %v385, 1.442695
        %v402 = vpow.pop %v401
        %v403 = vmul.f32 %v386, 1.442695
        %v404 = vpow.pop %v403
        %v405 = vmul.f32 %v387, 1.442695
        %v406 = vpow.pop %v405
        %v407 = vmul.f32 %v388, 1.442695
        %v408 = vpow.pop %v407
        %v409 = vmul.f32 %v389, 1.442695
        %v410 = vpow.pop %v409
        %v411 = vmul.f32 %v390, 1.442695
        %v412 = vpow.pop %v411
        %v413 = vmul.f32 %v391, 1.442695
        %v414 = vpow.pop %v413
        %v415 = vmul.f32 %v392, 1.442695
        %v416 = vpow.pop %v415
        %v417 = vmul.f32 %v393, 1.442695
        %v418 = vpow.pop %v417
        %v419 = vmul.f32 %v394, 1.442695
        %v420 = vpow.pop %v419
        %v421 = vmul.f32 %v395, 1.442695
        %v422 = vpow.pop %v421
        %v423 = vmul.f32 %v396, 1.442695
        %v424 = vpow.pop %v423
        %v425 = vmul.f32 %v397, 1.442695
        %v426 = vpow.pop %v425
        %v427 = vmul.f32 %v398, 1.442695
        %v428 = vpow.pop %v427
        %v429 = vmul.f32 %v399, 1.442695
        %v430 = vpow.pop %v429
        %v431 = vmul.f32 %v400, 1.442695
        %v432 = vpow.pop %v431
        %v433 = vadd.f32 %v402, 1.0
        %v434 = vadd.f32 %v404, 1.0
        %v435 = vadd.f32 %v406, 1.0
        %v436 = vadd.f32 %v408, 1.0
        %v437 = vadd.f32 %v410, 1.0
        %v438 = vadd.f32 %v412, 1.0
        %v439 = vadd.f32 %v414, 1.0
        %v440 = vadd.f32 %v416, 1.0
        %v441 = vadd.f32 %v418, 1.0
        %v442 = vadd.f32 %v420, 1.0
        %v443 = vadd.f32 %v422, 1.0
        %v444 = vadd.f32 %v424, 1.0
        %v445 = vadd.f32 %v426, 1.0
        %v446 = vadd.f32 %v428, 1.0
        %v447 = vadd.f32 %v430, 1.0
        %v448 = vadd.f32 %v432, 1.0
        %v449 = vrcp.pop %v433
        %v450 = vmul.f32 %v433, %v449
        %v451 = vsub.f32 1.0, %v450
        %v452 = vmul.f32 %v449, %v451
        %v453 = vadd.f32 %v449, %v452
        %vm454 = vweird.f32 %v433
        %vm455 = vweird.f32 %v449
        %vm456 = vmor %vm454, %vm455
        %v457 = vsel %vm456, %v449, %v453
        %v458 = vand.u32 2147483647, %v433
        %vm459 = vcmp.eq.f32.partialorder %v458, 8.507059e+37
        %v460 = vand.u32 %v433, 2147483648
        %v461 = vor.u32 1.1754944e-38, %v460
        %v462 = vsel %vm459, %v461, %v457
        %v463 = vmul.f32 1.0, %v462
        %v464 = vrcp.pop %v434
        %v465 = vmul.f32 %v434, %v464
        %v466 = vsub.f32 1.0, %v465
        %v467 = vmul.f32 %v464, %v466
        %v468 = vadd.f32 %v464, %v467
        %vm469 = vweird.f32 %v434
        %vm470 = vweird.f32 %v464
        %vm471 = vmor %vm469, %vm470
        %v472 = vsel %vm471, %v464, %v468
        %v473 = vand.u32 2147483647, %v434
        %vm474 = vcmp.eq.f32.partialorder %v473, 8.507059e+37
        %v475 = vand.u32 %v434, 2147483648
        %v476 = vor.u32 1.1754944e-38, %v475
        %v477 = vsel %vm474, %v476, %v472
        %v478 = vmul.f32 1.0, %v477
        %v479 = vrcp.pop %v435
        %v480 = vmul.f32 %v435, %v479
        %v481 = vsub.f32 1.0, %v480
        %v482 = vmul.f32 %v479, %v481
        %v483 = vadd.f32 %v479, %v482
        %vm484 = vweird.f32 %v435
        %vm485 = vweird.f32 %v479
        %vm486 = vmor %vm484, %vm485
        %v487 = vsel %vm486, %v479, %v483
        %v488 = vand.u32 2147483647, %v435
        %vm489 = vcmp.eq.f32.partialorder %v488, 8.507059e+37
        %v490 = vand.u32 %v435, 2147483648
        %v491 = vor.u32 1.1754944e-38, %v490
        %v492 = vsel %vm489, %v491, %v487
        %v493 = vmul.f32 1.0, %v492
        %v494 = vrcp.pop %v436
        %v495 = vmul.f32 %v436, %v494
        %v496 = vsub.f32 1.0, %v495
        %v497 = vmul.f32 %v494, %v496
        %v498 = vadd.f32 %v494, %v497
        %vm499 = vweird.f32 %v436
        %vm500 = vweird.f32 %v494
        %vm501 = vmor %vm499, %vm500
        %v502 = vsel %vm501, %v494, %v498
        %v503 = vand.u32 2147483647, %v436
        %vm504 = vcmp.eq.f32.partialorder %v503, 8.507059e+37
        %v505 = vand.u32 %v436, 2147483648
        %v506 = vor.u32 1.1754944e-38, %v505
        %v507 = vsel %vm504, %v506, %v502
        %v508 = vmul.f32 1.0, %v507
        %v509 = vrcp.pop %v437
        %v510 = vmul.f32 %v437, %v509
        %v511 = vsub.f32 1.0, %v510
        %v512 = vmul.f32 %v509, %v511
        %v513 = vadd.f32 %v509, %v512
        %vm514 = vweird.f32 %v437
        %vm515 = vweird.f32 %v509
        %vm516 = vmor %vm514, %vm515
        %v517 = vsel %vm516, %v509, %v513
        %v518 = vand.u32 2147483647, %v437
        %vm519 = vcmp.eq.f32.partialorder %v518, 8.507059e+37
        %v520 = vand.u32 %v437, 2147483648
        %v521 = vor.u32 1.1754944e-38, %v520
        %v522 = vsel %vm519, %v521, %v517
        %v523 = vmul.f32 1.0, %v522
        %v524 = vrcp.pop %v438
        %v525 = vmul.f32 %v438, %v524
        %v526 = vsub.f32 1.0, %v525
        %v527 = vmul.f32 %v524, %v526
        %v528 = vadd.f32 %v524, %v527
        %vm529 = vweird.f32 %v438
        %vm530 = vweird.f32 %v524
        %vm531 = vmor %vm529, %vm530
        %v532 = vsel %vm531, %v524, %v528
        %v533 = vand.u32 2147483647, %v438
        %vm534 = vcmp.eq.f32.partialorder %v533, 8.507059e+37
        %v535 = vand.u32 %v438, 2147483648
        %v536 = vor.u32 1.1754944e-38, %v535
        %v537 = vsel %vm534, %v536, %v532
        %v538 = vmul.f32 1.0, %v537
        %v539 = vrcp.pop %v439
        %v540 = vmul.f32 %v439, %v539
        %v541 = vsub.f32 1.0, %v540
        %v542 = vmul.f32 %v539, %v541
        %v543 = vadd.f32 %v539, %v542
        %vm544 = vweird.f32 %v439
        %vm545 = vweird.f32 %v539
        %vm546 = vmor %vm544, %vm545
        %v547 = vsel %vm546, %v539, %v543
        %v548 = vand.u32 2147483647, %v439
        %vm549 = vcmp.eq.f32.partialorder %v548, 8.507059e+37
        %v550 = vand.u32 %v439, 2147483648
        %v551 = vor.u32 1.1754944e-38, %v550
        %v552 = vsel %vm549, %v551, %v547
        %v553 = vmul.f32 1.0, %v552
        %v554 = vrcp.pop %v440
        %v555 = vmul.f32 %v440, %v554
        %v556 = vsub.f32 1.0, %v555
        %v557 = vmul.f32 %v554, %v556
        %v558 = vadd.f32 %v554, %v557
        %vm559 = vweird.f32 %v440
        %vm560 = vweird.f32 %v554
        %vm561 = vmor %vm559, %vm560
        %v562 = vsel %vm561, %v554, %v558
        %v563 = vand.u32 2147483647, %v440
        %vm564 = vcmp.eq.f32.partialorder %v563, 8.507059e+37
        %v565 = vand.u32 %v440, 2147483648
        %v566 = vor.u32 1.1754944e-38, %v565
        %v567 = vsel %vm564, %v566, %v562
        %v568 = vmul.f32 1.0, %v567
        %v569 = vrcp.pop %v441
        %v570 = vmul.f32 %v441, %v569
        %v571 = vsub.f32 1.0, %v570
        %v572 = vmul.f32 %v569, %v571
        %v573 = vadd.f32 %v569, %v572
        %vm574 = vweird.f32 %v441
        %vm575 = vweird.f32 %v569
        %vm576 = vmor %vm574, %vm575
        %v577 = vsel %vm576, %v569, %v573
        %v578 = vand.u32 2147483647, %v441
        %vm579 = vcmp.eq.f32.partialorder %v578, 8.507059e+37
        %v580 = vand.u32 %v441, 2147483648
        %v581 = vor.u32 1.1754944e-38, %v580
        %v582 = vsel %vm579, %v581, %v577
        %v583 = vmul.f32 1.0, %v582
        %v584 = vrcp.pop %v442
        %v585 = vmul.f32 %v442, %v584
        %v586 = vsub.f32 1.0, %v585
        %v587 = vmul.f32 %v584, %v586
        %v588 = vadd.f32 %v584, %v587
        %vm589 = vweird.f32 %v442
        %vm590 = vweird.f32 %v584
        %vm591 = vmor %vm589, %vm590
        %v592 = vsel %vm591, %v584, %v588
        %v593 = vand.u32 2147483647, %v442
        %vm594 = vcmp.eq.f32.partialorder %v593, 8.507059e+37
        %v595 = vand.u32 %v442, 2147483648
        %v596 = vor.u32 1.1754944e-38, %v595
        %v597 = vsel %vm594, %v596, %v592
        %v598 = vmul.f32 1.0, %v597
        %v599 = vrcp.pop %v443
        %v600 = vmul.f32 %v443, %v599
        %v601 = vsub.f32 1.0, %v600
        %v602 = vmul.f32 %v599, %v601
        %v603 = vadd.f32 %v599, %v602
        %vm604 = vweird.f32 %v443
        %vm605 = vweird.f32 %v599
        %vm606 = vmor %vm604, %vm605
        %v607 = vsel %vm606, %v599, %v603
        %v608 = vand.u32 2147483647, %v443
        %vm609 = vcmp.eq.f32.partialorder %v608, 8.507059e+37
        %v610 = vand.u32 %v443, 2147483648
        %v611 = vor.u32 1.1754944e-38, %v610
        %v612 = vsel %vm609, %v611, %v607
        %v613 = vmul.f32 1.0, %v612
        %v614 = vrcp.pop %v444
        %v615 = vmul.f32 %v444, %v614
        %v616 = vsub.f32 1.0, %v615
        %v617 = vmul.f32 %v614, %v616
        %v618 = vadd.f32 %v614, %v617
        %vm619 = vweird.f32 %v444
        %vm620 = vweird.f32 %v614
        %vm621 = vmor %vm619, %vm620
        %v622 = vsel %vm621, %v614, %v618
        %v623 = vand.u32 2147483647, %v444
        %vm624 = vcmp.eq.f32.partialorder %v623, 8.507059e+37
        %v625 = vand.u32 %v444, 2147483648
        %v626 = vor.u32 1.1754944e-38, %v625
        %v627 = vsel %vm624, %v626, %v622
        %v628 = vmul.f32 1.0, %v627
        %v629 = vrcp.pop %v445
        %v630 = vmul.f32 %v445, %v629
        %v631 = vsub.f32 1.0, %v630
        %v632 = vmul.f32 %v629, %v631
        %v633 = vadd.f32 %v629, %v632
        %vm634 = vweird.f32 %v445
        %vm635 = vweird.f32 %v629
        %vm636 = vmor %vm634, %vm635
        %v637 = vsel %vm636, %v629, %v633
        %v638 = vand.u32 2147483647, %v445
        %vm639 = vcmp.eq.f32.partialorder %v638, 8.507059e+37
        %v640 = vand.u32 %v445, 2147483648
        %v641 = vor.u32 1.1754944e-38, %v640
        %v642 = vsel %vm639, %v641, %v637
        %v643 = vmul.f32 1.0, %v642
        %v644 = vrcp.pop %v446
        %v645 = vmul.f32 %v446, %v644
        %v646 = vsub.f32 1.0, %v645
        %v647 = vmul.f32 %v644, %v646
        %v648 = vadd.f32 %v644, %v647
        %vm649 = vweird.f32 %v446
        %vm650 = vweird.f32 %v644
        %vm651 = vmor %vm649, %vm650
        %v652 = vsel %vm651, %v644, %v648
        %v653 = vand.u32 2147483647, %v446
        %vm654 = vcmp.eq.f32.partialorder %v653, 8.507059e+37
        %v655 = vand.u32 %v446, 2147483648
        %v656 = vor.u32 1.1754944e-38, %v655
        %v657 = vsel %vm654, %v656, %v652
        %v658 = vmul.f32 1.0, %v657
        %v659 = vrcp.pop %v447
        %v660 = vmul.f32 %v447, %v659
        %v661 = vsub.f32 1.0, %v660
        %v662 = vmul.f32 %v659, %v661
        %v663 = vadd.f32 %v659, %v662
        %vm664 = vweird.f32 %v447
        %vm665 = vweird.f32 %v659
        %vm666 = vmor %vm664, %vm665
        %v667 = vsel %vm666, %v659, %v663
        %v668 = vand.u32 2147483647, %v447
        %vm669 = vcmp.eq.f32.partialorder %v668, 8.507059e+37
        %v670 = vand.u32 %v447, 2147483648
        %v671 = vor.u32 1.1754944e-38, %v670
        %v672 = vsel %vm669, %v671, %v667
        %v673 = vmul.f32 1.0, %v672
        %v674 = vrcp.pop %v448
        %v675 = vmul.f32 %v448, %v674
        %v676 = vsub.f32 1.0, %v675
        %v677 = vmul.f32 %v674, %v676
        %v678 = vadd.f32 %v674, %v677
        %vm679 = vweird.f32 %v448
        %vm680 = vweird.f32 %v674
        %vm681 = vmor %vm679, %vm680
        %v682 = vsel %vm681, %v674, %v678
        %v683 = vand.u32 2147483647, %v448
        %vm684 = vcmp.eq.f32.partialorder %v683, 8.507059e+37
        %v685 = vand.u32 %v448, 2147483648
        %v686 = vor.u32 1.1754944e-38, %v685
        %v687 = vsel %vm684, %v686, %v682
        %v688 = vmul.f32 1.0, %v687
        %689 = vst [vmem:[%s137] sm:$0xff] %v463
        %690 = vst [vmem:[%s137 + $0x8] sm:$0xff] %v478
        %691 = vst [vmem:[%s137 + $0x10] sm:$0xff] %v493
        %692 = vst [vmem:[%s137 + $0x18] sm:$0xff] %v508
        %693 = vst [vmem:[%s137 + $0x20] sm:$0xff] %v523
        %694 = vst [vmem:[%s137 + $0x28] sm:$0xff] %v538
        %695 = vst [vmem:[%s137 + $0x30] sm:$0xff] %v553
        %696 = vst [vmem:[%s137 + $0x38] sm:$0xff] %v568
        %697 = vst [vmem:[%s137 + $0x40] sm:$0xff] %v583
        %698 = vst [vmem:[%s137 + $0x48] sm:$0xff] %v598
        %699 = vst [vmem:[%s137 + $0x50] sm:$0xff] %v613
        %700 = vst [vmem:[%s137 + $0x58] sm:$0xff] %v628
        %701 = vst [vmem:[%s137 + $0x60] sm:$0xff] %v643
        %702 = vst [vmem:[%s137 + $0x68] sm:$0xff] %v658
        %703 = vst [vmem:[%s137 + $0x70] sm:$0xff] %v673
        %704 = vst [vmem:[%s137 + $0x78] sm:$0xff] %v688
        %s705 = sand.u32 %s52, 1
        %s706 = scalar_lea.sflag [#allocation4], %s705
        %s707 = sand.u32 %s52, 1
        %s708 = smul.addr %s707, 128
        %s709 = scalar_lea.vmem [#allocation5], %s708
        // Predicated region
        $region29: #{tpu_custom_call.1} parent=23 // pred_check
          %p710 = pneg %p62
        $region30: #{tpu_custom_call.1} parent=23 // pred_check_branch
          %712 = sbr.rel (%p710) target = $region32
        $region31: #{tpu_custom_call.1} parent=23 // pred_region
          %s713 = smul.u32 2, %s18
          %715 = vsyncadd %s706, 0
          %s716 = smul.addr %s713, 8
          %s717 = smul.addr %s716, 8
          %s718 = scalar_lea.hbm %s1, %s717
          %s719 = sshll.u32 %s709, 4
          %s720 = int_to_ptr.vmem [resolvable:$true] %s719
          %s721 = sshll.u32 %s718, 4
          %s722 = int_to_ptr.hbm [resolvable:$true] %s721
          %727 = dma.vmem_to_hbm [thread:$0]  %s720, 2048, %s722, %s706, 128, 128, 8
        $region32: #{tpu_custom_call.1} parent=23 // pred_fallthru
          _
      $region24: #{tpu_custom_call.1} parent=5 // pred_fallthru
        _
      %p728 = scmp.le.s32.totalorder 2, %s13
      // Predicated region
      $region33: #{tpu_custom_call.1} parent=5 // pred_check
        %p729 = pneg %p728
      $region34: #{tpu_custom_call.1} parent=5 // pred_check_branch
        %731 = sbr.rel (%p729) target = $region36
      $region35: #{tpu_custom_call.1} parent=5 // pred_region
        %s732 = ssub.s32 %s13, 2
        // Predicated region
        $region37: #{tpu_custom_call.1} parent=35 // pred_check
          %p733 = pneg %p68
        $region38: #{tpu_custom_call.1} parent=35 // pred_check_branch
          %735 = sbr.rel (%p733) target = $region40
        $region39: #{tpu_custom_call.1} parent=35 // pred_region
          %s736 = sand.u32 %s53, 1
          %s737 = scalar_lea.sflag [#allocation4], %s736
          %s738 = sand.u32 %s53, 1
          %s739 = smul.addr %s738, 128
          %s740 = scalar_lea.vmem [#allocation5], %s739
          %742 = dma.done %s737, 2048
        $region40: #{tpu_custom_call.1} parent=35 // pred_fallthru
          _
      $region36: #{tpu_custom_call.1} parent=5 // pred_fallthru
        _
    $region6: #{tpu_custom_call.1} parent=1 // loop_footer
      %s17 = sadd.s32 1, %s13
    $region7: #{tpu_custom_call.1} parent=1 // loop_footer_branch
      %12 = sbr.rel target = $region3
    $region8: #{tpu_custom_call.1} parent=1 // loop_exit
      _
    %743 = vsyncpa [#allocation3], 1
    %s744 = scalar_lea.sflag [#allocation3], 1
    %745 = vsyncpa %s744, 1
    %746 = vsyncpa [#allocation4], 1
    %s747 = scalar_lea.sflag [#allocation4], 1
    %748 = vsyncpa %s747, 1

</llo_original>
